<compile_context>
chip_gen: v7x
topology: tpu7x:2x2x1
jax: 0.10.0
libtpu: 0.0.40
codegen_flags: <defaults>
</compile_context>

<pallas_src>
import math
import numpy as np
import jax
import jax.numpy as jnp
from jax.experimental import pallas as pl
from jax.experimental.pallas import tpu as pltpu

# ---- static problem sizes ----------------------------------------------------
N = 2              # batch
SEQ_LEN = 60       # sequence_length (divisible by 15 then by 2, matching the
                   # module's conv_size arithmetic exactly)
FEAT = 4           # feature_length
K1 = 15            # first conv kernel size
K2 = 3             # second conv kernel size
POOL1 = 15
POOL1_PAD = 16     # pool-1 window padded to 16 taps (pad tap = zero column)
POOL2 = 2
P1 = SEQ_LEN // POOL1          # length after first maxpool  -> 4
P2 = P1 // POOL2               # length after second maxpool -> 2
HIDDEN = 512
HIDDEN2 = 256
NUM_CLASSES = 2
FC_IN = P2 + FEAT              # 6
BN_EPS = 1e-5
C1_LANES = P1 * POOL1_PAD      # 64 conv-1 output lanes (tap-major layout)
C2_LANES = P2 * POOL2          # 4  conv-2 output lanes (pos-major layout)


# ---- kernel -------------------------------------------------------------------
def convnet_kernel(x_ref, y_ref, t1_ref, b1_ref, t2_ref, b2_ref,
                   whp_ref, why_ref, bh_ref, wh2_ref, bh2_ref, wf_ref, bf_ref,
                   out_ref):
    f32 = jnp.float32
    bf16 = jnp.bfloat16

    # layer1: Conv1d(k=15,pad=7) + eval-BN folded into one MXU matmul whose
    # output columns are permuted to lane = P1*tap + window (tap 15 is a zero
    # pad column); per-lane bias vector carries the folded shift (0 on pads).
    c1 = jnp.dot(x_ref[...], t1_ref[...], preferred_element_type=f32)
    h1 = jnp.maximum(c1 + b1_ref[...], 0.0)               # (N, 64), >= 0

    # MaxPool1d(15,15): tap-major layout -> 4-step lane-aligned binary max
    # tree (pad tap is 0, harmless post-ReLU). Result is window-major (N, P1).
    a = jnp.maximum(h1[:, 0:32], h1[:, 32:64])
    a = jnp.maximum(a[:, 0:16], a[:, 16:32])
    a = jnp.maximum(a[:, 0:8],  a[:, 8:16])
    p1 = jnp.maximum(a[:, 0:4], a[:, 4:8])                # (N, P1)

    # layer2: Conv1d(k=3,pad=1) + BN as a tiny matmul, columns permuted to
    # lane = P2*pos + window; MaxPool1d(2,2) = one jnp.maximum of halves.
    c2 = jnp.dot(p1, t2_ref[...], preferred_element_type=f32)
    h2 = jnp.maximum(c2 + b2_ref[...], 0.0)               # (N, 4)
    p2 = jnp.maximum(h2[:, 0:P2], h2[:, P2:2 * P2])       # (N, P2)

    # MLP head. concat(pooled, y) eliminated by splitting fc_hidden's weight.
    # TODO(synk): Dropout(p=0.21) is treated as identity (eval/inference mode).
    z1 = jnp.dot(p2.astype(bf16), whp_ref[...], preferred_element_type=f32)
    z1 = z1 + jnp.dot(y_ref[...].astype(bf16), why_ref[...],
                      preferred_element_type=f32)
    z1 = jnp.maximum(z1 + bh_ref[...], 0.0)
    z2 = jnp.maximum(
        jnp.dot(z1.astype(bf16), wh2_ref[...], preferred_element_type=f32)
        + bh2_ref[...], 0.0)
    logits = (jnp.dot(z2.astype(bf16), wf_ref[...], preferred_element_type=f32)
              + bf_ref[...])

    # nn.Softmax() on a 2-D input -> softmax over dim=1 (EUP recip + VALU mul).
    m = jnp.max(logits, axis=1, keepdims=True)
    e = jnp.exp(logits - m)
    out_ref[...] = e * pl.reciprocal(jnp.sum(e, axis=1, keepdims=True),
                                     approx=True)


# ---- one-time host-side parameter folding -------------------------------------
def prepare_params(params):
    """Fold conv weights/biases + eval-mode BatchNorm into permuted band
    matrices and per-lane bias vectors, split fc_hidden's weight, and cast the
    big MLP weights to bfloat16.  Call ONCE and reuse for every forward call.
    """
    (w1, b1, bn1, w2, b2, bn2, wh, bh, wh2, bh2, wf, bf) = params
    g1, be1, m1, v1 = bn1
    g2, be2, m2, v2 = bn2
    s1 = float(g1) / math.sqrt(float(v1) + BN_EPS)
    s2 = float(g2) / math.sqrt(float(v2) + BN_EPS)
    shift1 = (float(b1) - float(m1)) * s1 + float(be1)
    shift2 = (float(b2) - float(m2)) * s2 + float(be2)

    w1n = np.asarray(w1, np.float64)
    w2n = np.asarray(w2, np.float64)

    # Conv1 band matrix: out = x @ t1 implements 'same' conv + zero pad + BN
    # scale; output columns permuted to lane = P1*tap + window.
    t1 = np.zeros((SEQ_LEN, C1_LANES), np.float64)
    b1v = np.zeros((1, C1_LANES), np.float64)
    for j in range(P1):
        for t in range(POOL1):
            o = POOL1 * j + t            # original conv-1 output position
            lane = P1 * t + j            # permuted lane
            for k in range(K1):
                r = o + k - K1 // 2
                if 0 <= r < SEQ_LEN:
                    t1[r, lane] = w1n[k] * s1
            b1v[0, lane] = shift1
    # lanes with tap == POOL1 (per-window pad) stay all-zero -> 0 post-ReLU.

    # Conv2 band matrix: columns permuted to lane = P2*pos + window.
    t2 = np.zeros((P1, C2_LANES), np.float64)
    b2v = np.full((1, C2_LANES), shift2, np.float64)
    for j in range(P2):
        for t in range(POOL2):
            o = POOL2 * j + t            # original conv-2 output position
            lane = P2 * t + j
            for k in range(K2):
                r = o + k - K2 // 2
                if 0 <= r < P1:
                    t2[r, lane] = w2n[k] * s2

    return (
        jnp.asarray(t1, jnp.float32),        # band matrices stay f32 (tiny)
        jnp.asarray(b1v, jnp.float32),
        jnp.asarray(t2, jnp.float32),
        jnp.asarray(b2v, jnp.float32),
        wh[:P2].astype(jnp.bfloat16),        # fc_hidden rows for pooled feats
        wh[P2:].astype(jnp.bfloat16),        # fc_hidden rows for y
        jnp.asarray(bh, jnp.float32),
        wh2.astype(jnp.bfloat16),
        jnp.asarray(bh2, jnp.float32),
        wf.astype(jnp.bfloat16),
        jnp.asarray(bf, jnp.float32),
    )


@jax.jit
def convnet_forward(x, y, folded):
    """x: (N, SEQ_LEN) f32 (PyTorch's (N,1,SEQ_LEN) with channel squeezed);
    y: (N, FEAT) f32; `folded` = prepare_params(params) (computed once)."""
    vmem = pl.BlockSpec(memory_space=pltpu.MemorySpace.VMEM)
    # Whole problem (< 0.5 MiB of weights) stays VMEM-resident as one block:
    # no grid, no batch padding, no output slicing.  (If batch ever grows,
    # add a ("parallel",) grid over batch tiles to use both v7x TensorCores.)
    return pl.pallas_call(
        convnet_kernel,
        out_shape=jax.ShapeDtypeStruct((x.shape[0], NUM_CLASSES), jnp.float32),
        in_specs=[vmem] * 13,
        out_specs=vmem,
    )(x, y, *folded)


# ---- pure-JAX reference (mirrors the PyTorch forward in eval mode) ------------
def reference_forward(x, y, params):
    (w1, b1, bn1, w2, b2, bn2, wh, bh, wh2, bh2, wf, bf) = params
    g1, be1, m1, v1 = bn1
    g2, be2, m2, v2 = bn2
    n = x.shape[0]

    xpad = jnp.pad(x, ((0, 0), (K1 // 2, K1 // 2)))
    c1 = sum(w1[k] * xpad[:, k:k + SEQ_LEN] for k in range(K1)) + b1
    h1 = jnp.maximum((c1 - m1) * (g1 / np.sqrt(v1 + BN_EPS)) + be1, 0.0)
    p1 = h1.reshape(n, P1, POOL1).max(axis=2)

    p1pad = jnp.pad(p1, ((0, 0), (1, 1)))
    c2 = sum(w2[k] * p1pad[:, k:k + P1] for k in range(K2)) + b2
    h2 = jnp.maximum((c2 - m2) * (g2 / np.sqrt(v2 + BN_EPS)) + be2, 0.0)
    p2 = h2.reshape(n, P2, POOL2).max(axis=2)

    feat = jnp.concatenate([p2, y], axis=1)
    z1 = jnp.maximum(feat @ wh + bh, 0.0)
    z2 = jnp.maximum(z1 @ wh2 + bh2, 0.0)
    logits = z2 @ wf + bf
    return jax.nn.softmax(logits, axis=1)


def make_params():
    key = jax.random.PRNGKey(0)
    ks = jax.random.split(key, 10)

    # conv weights / biases (raw, PyTorch-style)
    w1 = jax.random.normal(ks[0], (K1,), jnp.float32) * 0.2
    b1 = jnp.float32(0.10)
    w2 = jax.random.normal(ks[1], (K2,), jnp.float32) * 0.3
    b2 = jnp.float32(-0.05)

    # BatchNorm1d(1) eval-mode params: (gamma, beta, running_mean, running_var)
    bn1 = (1.3, 0.2, 0.1, 0.9)
    bn2 = (0.8, -0.1, -0.05, 1.1)

    # Linear layers, stored as (in, out); biases as (1, out)
    wh = jax.random.normal(ks[2], (FC_IN, HIDDEN), jnp.float32) * 0.10
    bh = jax.random.normal(ks[3], (1, HIDDEN), jnp.float32) * 0.05
    wh2 = jax.random.normal(ks[4], (HIDDEN, HIDDEN2), jnp.float32) * 0.05
    bh2 = jax.random.normal(ks[5], (1, HIDDEN2), jnp.float32) * 0.05
    wf = jax.random.normal(ks[6], (HIDDEN2, NUM_CLASSES), jnp.float32) * 0.05
    bf = jax.random.normal(ks[7], (1, NUM_CLASSES), jnp.float32) * 0.05

    return (w1, b1, bn1, w2, b2, bn2, wh, bh, wh2, bh2, wf, bf), ks


if __name__ == "__main__":
    params, ks = make_params()
    folded = prepare_params(params)      # one-time host folding (hoisted)

    # inputs: x is (N, 1, SEQ_LEN) in PyTorch; channel squeezed here
    x = jax.random.normal(ks[8], (N, SEQ_LEN), jnp.float32)
    y = jax.random.normal(ks[9], (N, FEAT), jnp.float32)

    out = jax.block_until_ready(convnet_forward(x, y, folded))
    ref = jax.block_until_ready(reference_forward(x, y, params))

    # tolerance loosened for the bf16 MLP weights + approx reciprocal
    np.testing.assert_allclose(np.asarray(out, np.float32),
                               np.asarray(ref, np.float32),
                               rtol=5e-2, atol=2.5e-2)
    assert out.shape == (N, NUM_CLASSES)
    print("KERNEL_OK")
</pallas_src>

<mosaic_0001>
module attributes {stable_mosaic.version = 11 : i64} {
  func.func @convnet_kernel(%arg0: memref<2x60xf32, #tpu.memory_space<vmem>>, %arg1: memref<2x4xf32, #tpu.memory_space<vmem>>, %arg2: memref<60x64xf32, #tpu.memory_space<vmem>>, %arg3: memref<1x64xf32, #tpu.memory_space<vmem>>, %arg4: memref<4x4xf32, #tpu.memory_space<vmem>>, %arg5: memref<1x4xf32, #tpu.memory_space<vmem>>, %arg6: memref<2x512xbf16, #tpu.memory_space<vmem>>, %arg7: memref<4x512xbf16, #tpu.memory_space<vmem>>, %arg8: memref<1x512xf32, #tpu.memory_space<vmem>>, %arg9: memref<512x256xbf16, #tpu.memory_space<vmem>>, %arg10: memref<1x256xf32, #tpu.memory_space<vmem>>, %arg11: memref<256x2xbf16, #tpu.memory_space<vmem>>, %arg12: memref<1x2xf32, #tpu.memory_space<vmem>>, %arg13: memref<2x2xf32, #tpu.memory_space<vmem>>) attributes {dimension_semantics = [], scalar_prefetch = 0 : i64, scratch_operands = 0 : i64, tpu.core_type = #tpu.core_type<tc>} {
    %c0 = arith.constant 0 : index
    %c0_0 = arith.constant 0 : index
    %0 = vector.load %arg0[%c0, %c0_0] : memref<2x60xf32, #tpu.memory_space<vmem>>, vector<2x60xf32>
    %c0_1 = arith.constant 0 : index
    %c0_2 = arith.constant 0 : index
    %1 = vector.load %arg2[%c0_1, %c0_2] : memref<60x64xf32, #tpu.memory_space<vmem>>, vector<60x64xf32>
    %cst = arith.constant dense<0.000000e+00> : vector<2x64xf32>
    %2 = tpu.matmul %0, %1, %cst {dimension_numbers = #tpu.dot_dimension_numbers<[1], [0], [0], [1], [0, 0, 1, 1], [], []>} : vector<2x60xf32>, vector<60x64xf32>, vector<2x64xf32> -> vector<2x64xf32>
    %c0_3 = arith.constant 0 : index
    %c0_4 = arith.constant 0 : index
    %3 = vector.load %arg3[%c0_3, %c0_4] : memref<1x64xf32, #tpu.memory_space<vmem>>, vector<1x64xf32>
    %4 = vector.broadcast %3 : vector<1x64xf32> to vector<2x64xf32>
    %5 = arith.addf %2, %4 : vector<2x64xf32>
    %cst_5 = arith.constant 0.000000e+00 : f32
    %6 = vector.broadcast %cst_5 : f32 to vector<2x64xf32>
    %7 = arith.maximumf %5, %6 : vector<2x64xf32>
    %8 = vector.extract_strided_slice %7 {offsets = [0, 0], sizes = [2, 32], strides = [1, 1]} : vector<2x64xf32> to vector<2x32xf32>
    %9 = vector.extract_strided_slice %7 {offsets = [0, 32], sizes = [2, 32], strides = [1, 1]} : vector<2x64xf32> to vector<2x32xf32>
    %10 = arith.maximumf %8, %9 : vector<2x32xf32>
    %11 = vector.extract_strided_slice %10 {offsets = [0, 0], sizes = [2, 16], strides = [1, 1]} : vector<2x32xf32> to vector<2x16xf32>
    %12 = vector.extract_strided_slice %10 {offsets = [0, 16], sizes = [2, 16], strides = [1, 1]} : vector<2x32xf32> to vector<2x16xf32>
    %13 = arith.maximumf %11, %12 : vector<2x16xf32>
    %14 = vector.extract_strided_slice %13 {offsets = [0, 0], sizes = [2, 8], strides = [1, 1]} : vector<2x16xf32> to vector<2x8xf32>
    %15 = vector.extract_strided_slice %13 {offsets = [0, 8], sizes = [2, 8], strides = [1, 1]} : vector<2x16xf32> to vector<2x8xf32>
    %16 = arith.maximumf %14, %15 : vector<2x8xf32>
    %17 = vector.extract_strided_slice %16 {offsets = [0, 0], sizes = [2, 4], strides = [1, 1]} : vector<2x8xf32> to vector<2x4xf32>
    %18 = vector.extract_strided_slice %16 {offsets = [0, 4], sizes = [2, 4], strides = [1, 1]} : vector<2x8xf32> to vector<2x4xf32>
    %19 = arith.maximumf %17, %18 : vector<2x4xf32>
    %c0_6 = arith.constant 0 : index
    %c0_7 = arith.constant 0 : index
    %20 = vector.load %arg4[%c0_6, %c0_7] : memref<4x4xf32, #tpu.memory_space<vmem>>, vector<4x4xf32>
    %cst_8 = arith.constant dense<0.000000e+00> : vector<2x4xf32>
    %21 = tpu.matmul %19, %20, %cst_8 {dimension_numbers = #tpu.dot_dimension_numbers<[1], [0], [0], [1], [0, 0, 1, 1], [], []>} : vector<2x4xf32>, vector<4x4xf32>, vector<2x4xf32> -> vector<2x4xf32>
    %c0_9 = arith.constant 0 : index
    %c0_10 = arith.constant 0 : index
    %22 = vector.load %arg5[%c0_9, %c0_10] : memref<1x4xf32, #tpu.memory_space<vmem>>, vector<1x4xf32>
    %23 = vector.broadcast %22 : vector<1x4xf32> to vector<2x4xf32>
    %24 = arith.addf %21, %23 : vector<2x4xf32>
    %cst_11 = arith.constant 0.000000e+00 : f32
    %25 = vector.broadcast %cst_11 : f32 to vector<2x4xf32>
    %26 = arith.maximumf %24, %25 : vector<2x4xf32>
    %27 = vector.extract_strided_slice %26 {offsets = [0, 0], sizes = [2, 2], strides = [1, 1]} : vector<2x4xf32> to vector<2x2xf32>
    %28 = vector.extract_strided_slice %26 {offsets = [0, 2], sizes = [2, 2], strides = [1, 1]} : vector<2x4xf32> to vector<2x2xf32>
    %29 = arith.maximumf %27, %28 : vector<2x2xf32>
    %30 = arith.truncf %29 : vector<2x2xf32> to vector<2x2xbf16>
    %c0_12 = arith.constant 0 : index
    %c0_13 = arith.constant 0 : index
    %31 = vector.load %arg6[%c0_12, %c0_13] : memref<2x512xbf16, #tpu.memory_space<vmem>>, vector<2x512xbf16>
    %cst_14 = arith.constant dense<0.000000e+00> : vector<2x512xf32>
    %32 = tpu.matmul %30, %31, %cst_14 {dimension_numbers = #tpu.dot_dimension_numbers<[1], [0], [0], [1], [0, 0, 1, 1], [], []>} : vector<2x2xbf16>, vector<2x512xbf16>, vector<2x512xf32> -> vector<2x512xf32>
    %c0_15 = arith.constant 0 : index
    %c0_16 = arith.constant 0 : index
    %33 = vector.load %arg1[%c0_15, %c0_16] : memref<2x4xf32, #tpu.memory_space<vmem>>, vector<2x4xf32>
    %34 = arith.truncf %33 : vector<2x4xf32> to vector<2x4xbf16>
    %c0_17 = arith.constant 0 : index
    %c0_18 = arith.constant 0 : index
    %35 = vector.load %arg7[%c0_17, %c0_18] : memref<4x512xbf16, #tpu.memory_space<vmem>>, vector<4x512xbf16>
    %cst_19 = arith.constant dense<0.000000e+00> : vector<2x512xf32>
    %36 = tpu.matmul %34, %35, %cst_19 {dimension_numbers = #tpu.dot_dimension_numbers<[1], [0], [0], [1], [0, 0, 1, 1], [], []>} : vector<2x4xbf16>, vector<4x512xbf16>, vector<2x512xf32> -> vector<2x512xf32>
    %37 = arith.addf %32, %36 : vector<2x512xf32>
    %c0_20 = arith.constant 0 : index
    %c0_21 = arith.constant 0 : index
    %38 = vector.load %arg8[%c0_20, %c0_21] : memref<1x512xf32, #tpu.memory_space<vmem>>, vector<1x512xf32>
    %39 = vector.broadcast %38 : vector<1x512xf32> to vector<2x512xf32>
    %40 = arith.addf %37, %39 : vector<2x512xf32>
    %cst_22 = arith.constant 0.000000e+00 : f32
    %41 = vector.broadcast %cst_22 : f32 to vector<2x512xf32>
    %42 = arith.maximumf %40, %41 : vector<2x512xf32>
    %43 = arith.truncf %42 : vector<2x512xf32> to vector<2x512xbf16>
    %c0_23 = arith.constant 0 : index
    %c0_24 = arith.constant 0 : index
    %44 = vector.load %arg9[%c0_23, %c0_24] : memref<512x256xbf16, #tpu.memory_space<vmem>>, vector<512x256xbf16>
    %cst_25 = arith.constant dense<0.000000e+00> : vector<2x256xf32>
    %45 = tpu.matmul %43, %44, %cst_25 {dimension_numbers = #tpu.dot_dimension_numbers<[1], [0], [0], [1], [0, 0, 1, 1], [], []>} : vector<2x512xbf16>, vector<512x256xbf16>, vector<2x256xf32> -> vector<2x256xf32>
    %c0_26 = arith.constant 0 : index
    %c0_27 = arith.constant 0 : index
    %46 = vector.load %arg10[%c0_26, %c0_27] : memref<1x256xf32, #tpu.memory_space<vmem>>, vector<1x256xf32>
    %47 = vector.broadcast %46 : vector<1x256xf32> to vector<2x256xf32>
    %48 = arith.addf %45, %47 : vector<2x256xf32>
    %cst_28 = arith.constant 0.000000e+00 : f32
    %49 = vector.broadcast %cst_28 : f32 to vector<2x256xf32>
    %50 = arith.maximumf %48, %49 : vector<2x256xf32>
    %51 = arith.truncf %50 : vector<2x256xf32> to vector<2x256xbf16>
    %c0_29 = arith.constant 0 : index
    %c0_30 = arith.constant 0 : index
    %52 = vector.load %arg11[%c0_29, %c0_30] : memref<256x2xbf16, #tpu.memory_space<vmem>>, vector<256x2xbf16>
    %cst_31 = arith.constant dense<0.000000e+00> : vector<2x2xf32>
    %53 = tpu.matmul %51, %52, %cst_31 {dimension_numbers = #tpu.dot_dimension_numbers<[1], [0], [0], [1], [0, 0, 1, 1], [], []>} : vector<2x256xbf16>, vector<256x2xbf16>, vector<2x2xf32> -> vector<2x2xf32>
    %c0_32 = arith.constant 0 : index
    %c0_33 = arith.constant 0 : index
    %54 = vector.load %arg12[%c0_32, %c0_33] : memref<1x2xf32, #tpu.memory_space<vmem>>, vector<1x2xf32>
    %55 = vector.broadcast %54 : vector<1x2xf32> to vector<2x2xf32>
    %56 = arith.addf %53, %55 : vector<2x2xf32>
    %cst_34 = arith.constant dense<0xFF800000> : vector<2xf32>
    %57 = vector.multi_reduction <maximumf>, %56, %cst_34 [1] : vector<2x2xf32> to vector<2xf32>
    %58 = vector.shape_cast %57 : vector<2xf32> to vector<2x1xf32>
    %59 = vector.broadcast %58 : vector<2x1xf32> to vector<2x2xf32>
    %60 = arith.subf %56, %59 : vector<2x2xf32>
    %61 = math.exp %60 : vector<2x2xf32>
    %cst_35 = arith.constant dense<0.000000e+00> : vector<2xf32>
    %62 = vector.multi_reduction <add>, %61, %cst_35 [1] : vector<2x2xf32> to vector<2xf32>
    %63 = vector.shape_cast %62 : vector<2xf32> to vector<2x1xf32>
    %64 = tpu.reciprocal %63 {approx = true} : vector<2x1xf32> -> vector<2x1xf32>
    %65 = vector.broadcast %64 : vector<2x1xf32> to vector<2x2xf32>
    %66 = arith.mulf %61, %65 : vector<2x2xf32>
    %c0_36 = arith.constant 0 : index
    %c0_37 = arith.constant 0 : index
    %67 = vector.load %arg13[%c0_36, %c0_37] : memref<2x2xf32, #tpu.memory_space<vmem>>, vector<2x2xf32>
    tpu.vector_store %arg13[%c0_36, %c0_37], %66 {strides = array<i32>} : memref<2x2xf32, #tpu.memory_space<vmem>>, vector<2x2xf32>,
    return
  }
}

</mosaic_0001>

<llo_original>
// kernel: convnet_forward.1
$region0: #{convnet_forward.1}
  #allocation0 [shape = 'u32[]', space=smem, size = 0x4, offset = 0x4, fixed_abs, tag = 'smem constant byte address 0x4 - core index']
  #allocation1 [shape = 'u32[144,128]{1,0:T(1,128)}', space=vmem, size = 0x12000, scoped, tag = 'internal scratch']
  %s0 = inlined_call_operand.vmem [shape: f32[2,60], index: 0, kind: input, shape index: {}]
  %s1 = inlined_call_operand.vmem [shape: f32[2,4], index: 1, kind: input, shape index: {}]
  %s2 = inlined_call_operand.vmem [shape: f32[60,64], index: 2, kind: input, shape index: {}]
  %s3 = inlined_call_operand.vmem [shape: f32[1,64], index: 3, kind: input, shape index: {}]
  %s4 = inlined_call_operand.vmem [shape: f32[4,4], index: 4, kind: input, shape index: {}]
  %s5 = inlined_call_operand.vmem [shape: f32[1,4], index: 5, kind: input, shape index: {}]
  %s6 = inlined_call_operand.vmem [shape: bf16[2,512], index: 6, kind: input, shape index: {}]
  %s7 = inlined_call_operand.vmem [shape: bf16[4,512], index: 7, kind: input, shape index: {}]
  %s8 = inlined_call_operand.vmem [shape: f32[1,512], index: 8, kind: input, shape index: {}]
  %s9 = inlined_call_operand.hbm [shape: bf16[512,256], index: 9, kind: input, shape index: {}]
  %s10 = inlined_call_operand.vmem [shape: f32[1,256], index: 10, kind: input, shape index: {}]
  %s11 = inlined_call_operand.vmem [shape: bf16[256,2], index: 11, kind: input, shape index: {}]
  %s12 = inlined_call_operand.vmem [shape: f32[1,2], index: 12, kind: input, shape index: {}]
  %s13 = inlined_call_operand.hbm [shape: f32[2,2], index: 13, kind: output, shape index: {}]
  %s14 = sld [smem:[#allocation0]]
  $region66: #{convnet_forward.1} parent=0
    _
  %s16 = ssub.s32 1, %s14
  %s17 = scalar_select 0, %s16, %s14
  $region1: #{convnet_forward.1} parent=0
    #allocation2 [shape = 'u8[262144]{0}', space=vmem, size = 0x40000, scoped, tag = 'input window, operand 9, single buffered']
    #allocation3 [shape = 's32[1]{0}', space=sflag, size = 0x4, scoped, tag = 'scoped memory for convnet_forward.1']
    #allocation4 [shape = 's32[1]{0}', space=sflag, size = 0x4, scoped, tag = 'scoped memory for convnet_forward.1']
    #allocation5 [shape = 'u8[1024]{0}', space=vmem, size = 0x400, scoped, tag = 'output window, operand 0, single buffered']
    %18 = vsyncpa [#allocation3], 0
    %19 = vsyncpa [#allocation4], 0
    // Predicated region
    $region2: #{convnet_forward.1} parent=1 // pred_check
      _
    $region3: #{convnet_forward.1} parent=1 // pred_check_branch
      %21 = sbr.rel (0) target = $region5
    $region4: #{convnet_forward.1} parent=1 // pred_region
      _
    $region5: #{convnet_forward.1} parent=1 // pred_fallthru
      _
    // Predicated region
    $region6: #{convnet_forward.1} parent=1 // pred_check
      _
    $region7: #{convnet_forward.1} parent=1 // pred_check_branch
      %23 = sbr.rel (0) target = $region9
    $region8: #{convnet_forward.1} parent=1 // pred_region
      _
    $region9: #{convnet_forward.1} parent=1 // pred_fallthru
      _
    // Predicated region
    $region10: #{convnet_forward.1} parent=1 // pred_check
      _
    $region11: #{convnet_forward.1} parent=1 // pred_check_branch
      %25 = sbr.rel (0) target = $region13
    $region12: #{convnet_forward.1} parent=1 // pred_region
      _
    $region13: #{convnet_forward.1} parent=1 // pred_fallthru
      _
    // Predicated region
    $region14: #{convnet_forward.1} parent=1 // pred_check
      _
    $region15: #{convnet_forward.1} parent=1 // pred_check_branch
      %27 = sbr.rel (0) target = $region17
    $region16: #{convnet_forward.1} parent=1 // pred_region
      _
    $region17: #{convnet_forward.1} parent=1 // pred_fallthru
      _
    // Predicated region
    $region18: #{convnet_forward.1} parent=1 // pred_check
      _
    $region19: #{convnet_forward.1} parent=1 // pred_check_branch
      %29 = sbr.rel (0) target = $region21
    $region20: #{convnet_forward.1} parent=1 // pred_region
      _
    $region21: #{convnet_forward.1} parent=1 // pred_fallthru
      _
    // Predicated region
    $region22: #{convnet_forward.1} parent=1 // pred_check
      _
    $region23: #{convnet_forward.1} parent=1 // pred_check_branch
      %31 = sbr.rel (0) target = $region25
    $region24: #{convnet_forward.1} parent=1 // pred_region
      _
    $region25: #{convnet_forward.1} parent=1 // pred_fallthru
      _
    // Predicated region
    $region26: #{convnet_forward.1} parent=1 // pred_check
      _
    $region27: #{convnet_forward.1} parent=1 // pred_check_branch
      %33 = sbr.rel (0) target = $region29
    $region28: #{convnet_forward.1} parent=1 // pred_region
      _
    $region29: #{convnet_forward.1} parent=1 // pred_fallthru
      _
    // Predicated region
    $region30: #{convnet_forward.1} parent=1 // pred_check
      _
    $region31: #{convnet_forward.1} parent=1 // pred_check_branch
      %35 = sbr.rel (0) target = $region33
    $region32: #{convnet_forward.1} parent=1 // pred_region
      _
    $region33: #{convnet_forward.1} parent=1 // pred_fallthru
      _
    // Predicated region
    $region34: #{convnet_forward.1} parent=1 // pred_check
      _
    $region35: #{convnet_forward.1} parent=1 // pred_check_branch
      %37 = sbr.rel (0) target = $region37
    $region36: #{convnet_forward.1} parent=1 // pred_region
      _
    $region37: #{convnet_forward.1} parent=1 // pred_fallthru
      _
    // Predicated region
    $region38: #{convnet_forward.1} parent=1 // pred_check
      _
    $region39: #{convnet_forward.1} parent=1 // pred_check_branch
      %39 = sbr.rel (0) target = $region41
    $region40: #{convnet_forward.1} parent=1 // pred_region
      %s41 = ssub.s32 8192, 8192
      %42 = vsyncadd [#allocation3], %s41
      %s43 = sshll.u32 [#allocation2], 4
      %s44 = int_to_ptr.vmem [resolvable:$true] %s43
      %49 = dma.hbm_to_vmem [thread:$0]  %s9, 8192, %s44, [#allocation3], 128, 128, 8
    $region41: #{convnet_forward.1} parent=1 // pred_fallthru
      _
    // Predicated region
    $region42: #{convnet_forward.1} parent=1 // pred_check
      _
    $region43: #{convnet_forward.1} parent=1 // pred_check_branch
      %51 = sbr.rel (0) target = $region45
    $region44: #{convnet_forward.1} parent=1 // pred_region
      _
    $region45: #{convnet_forward.1} parent=1 // pred_fallthru
      _
    // Predicated region
    $region46: #{convnet_forward.1} parent=1 // pred_check
      _
    $region47: #{convnet_forward.1} parent=1 // pred_check_branch
      %53 = sbr.rel (0) target = $region49
    $region48: #{convnet_forward.1} parent=1 // pred_region
      _
    $region49: #{convnet_forward.1} parent=1 // pred_fallthru
      _
    // Predicated region
    $region50: #{convnet_forward.1} parent=1 // pred_check
      _
    $region51: #{convnet_forward.1} parent=1 // pred_check_branch
      %55 = sbr.rel (0) target = $region53
    $region52: #{convnet_forward.1} parent=1 // pred_region
      _
    $region53: #{convnet_forward.1} parent=1 // pred_fallthru
      _
    // Predicated region
    $region54: #{convnet_forward.1} parent=1 // pred_check
      _
    $region55: #{convnet_forward.1} parent=1 // pred_check_branch
      %57 = sbr.rel (0) target = $region57
    $region56: #{convnet_forward.1} parent=1 // pred_region
      %58 = dma.done [#allocation3], 8192
    $region57: #{convnet_forward.1} parent=1 // pred_fallthru
      _
    %v60 = vld [vmem:[%s0] sm:$0x3]
    %v61 = vld [vmem:[%s2] sm:$0xff]
    %v62 = vld [vmem:[%s2 + $0x8] sm:$0xff]
    %v63 = vld [vmem:[%s2 + $0x10] sm:$0xff]
    %v64 = vld [vmem:[%s2 + $0x18] sm:$0xff]
    %v65 = vld [vmem:[%s2 + $0x20] sm:$0xff]
    %v66 = vld [vmem:[%s2 + $0x28] sm:$0xff]
    %v67 = vld [vmem:[%s2 + $0x30] sm:$0xff]
    %v68 = vld [vmem:[%s2 + $0x38] sm:$0xf]
    %v69 = vld [vmem:[%s3] sm:$0x1]
    %v71 = vlaneseq
    %v72 = vshrl.u32 %v71, 7
    %v73 = vsub.s32 0, %v72
    %v74 = vrot.slane %v69, %v73
    %vm76 = vcmask 490496
    %v78 = vsel %vm76, %v60, 0
    %vm80 = vcmask 1043456
    %v82 = vsel %vm80, %v68, 0
    %84 = vmatprep.subr.mxu0 0.0
    %85 = vmatpush1.msra.mxu0 %v61
    %86 = vmatprep.subr.mxu0 0.0
    %87 = vmatpush1.msra.mxu0 %v62
    %88 = vmatprep.subr.mxu0 0.0
    %89 = vmatpush1.msra.mxu0 %v63
    %90 = vmatprep.subr.mxu0 0.0
    %91 = vmatpush1.msra.mxu0 %v64
    %92 = vmatprep.subr.mxu0 0.0
    %93 = vmatpush1.msra.mxu0 %v65
    %94 = vmatprep.subr.mxu0 0.0
    %95 = vmatpush1.msra.mxu0 %v66
    %96 = vmatprep.subr.mxu0 0.0
    %97 = vmatpush1.msra.mxu0 %v67
    %98 = vmatprep.subr.mxu0 0.0
    %99 = vmatpush1.msra.mxu0 %v82
    %100 = vmatprep.subr.mxu0 0.0
    %101 = vmatpush1.msra.mxu0 0.0
    %102 = vmatprep.subr.mxu0 0.0
    %103 = vmatpush1.msra.mxu0 0.0
    %104 = vmatprep.subr.mxu0 0.0
    %105 = vmatpush1.msra.mxu0 0.0
    %106 = vmatprep.subr.mxu0 0.0
    %107 = vmatpush1.msra.mxu0 0.0
    %108 = vmatprep.subr.mxu0 0.0
    %109 = vmatpush1.msra.mxu0 0.0
    %110 = vmatprep.subr.mxu0 0.0
    %111 = vmatpush1.msra.mxu0 0.0
    %112 = vmatprep.subr.mxu0 0.0
    %113 = vmatpush1.msra.mxu0 0.0
    %114 = vmatprep.subr.mxu0 0.0
    %115 = vmatpush1.msra.mxu0 0.0
    %116 = vmatprep.subr.mxu0 0.0
    %117 = vmatpush1.msra.mxu0 0.0
    %118 = vmatprep.subr.mxu0 0.0
    %119 = vmatpush1.msra.mxu0 0.0
    %120 = vmatprep.subr.mxu0 0.0
    %121 = vmatpush1.msra.mxu0 0.0
    %122 = vmatprep.subr.mxu0 0.0
    %123 = vmatpush1.msra.mxu0 0.0
    %124 = vmatprep.subr.mxu0 0.0
    %125 = vmatpush1.msra.mxu0 0.0
    %126 = vmatprep.subr.mxu0 0.0
    %127 = vmatpush1.msra.mxu0 0.0
    %128 = vmatprep.subr.mxu0 0.0
    %129 = vmatpush1.msra.mxu0 0.0
    %130 = vmatprep.subr.mxu0 0.0
    %131 = vmatpush1.msra.mxu0 0.0
    %132 = vmatprep.subr.mxu0 0.0
    %133 = vmatpush1.msra.mxu0 0.0
    %134 = vmatprep.subr.mxu0 0.0
    %135 = vmatpush1.msra.mxu0 0.0
    %136 = vmatprep.subr.mxu0 0.0
    %137 = vmatpush1.msra.mxu0 0.0
    %138 = vmatprep.subr.mxu0 0.0
    %139 = vmatpush1.msra.mxu0 0.0
    %140 = vmatprep.subr.mxu0 0.0
    %141 = vmatpush1.msra.mxu0 0.0
    %142 = vmatprep.subr.mxu0 0.0
    %143 = vmatpush1.msra.mxu0 0.0
    %144 = vmatprep.subr.mxu0 0.0
    %145 = vmatpush1.msra.mxu0 0.0
    %146 = vmatprep.subr.mxu0 0.0
    %147 = vmatpush1.msra.mxu0 0.0
    %148 = vmatprep.mubr.f32.mxu0 0.0
    %149 = vmatmul.mubr.f32.gmra.mrb[0].mxu0 %v78
    %v150 = vpop.f32.mrb[0].mxu0
    %v151 = vadd.f32 %v74, %v150
    %v152 = vpop.f32.mrb[0].mxu0
    %153 = vdwg.mxu0
    %v154 = vmax.f32 %v151, 0.0
    %156 = vrot.lane.b32.xlu0 %v154, 96
    %v157 = vpop.permute.xlu0 %156
    %v159 = vmax.f32 %v154, %v157
    %161 = vrot.lane.b32.xlu0 %v159, 112
    %v162 = vpop.permute.xlu0 %161
    %v164 = vmax.f32 %v159, %v162
    %166 = vrot.lane.b32.xlu0 %v164, 120
    %v167 = vpop.permute.xlu0 %166
    %v169 = vmax.f32 %v164, %v167
    %171 = vrot.lane.b32.xlu0 %v169, 124
    %v172 = vpop.permute.xlu0 %171
    %v174 = vmax.f32 %v169, %v172
    %v175 = vld [vmem:[%s4] sm:$0xf]
    %v176 = vld [vmem:[%s5] sm:$0x1]
    %v178 = vlaneseq
    %v179 = vshrl.u32 %v178, 7
    %v180 = vsub.s32 0, %v179
    %v181 = vrot.slane %v176, %v180
    %vm183 = vcmask 31744
    %v185 = vsel %vm183, %v174, 0
    %v188 = vsel %vm80, %v175, 0
    %190 = vmatprep.subr.mxu0 0.0
    %191 = vmatpush1.msra.mxu0 %v188
    %192 = vmatprep.subr.mxu0 0.0
    %193 = vmatpush1.msra.mxu0 0.0
    %194 = vmatprep.subr.mxu0 0.0
    %195 = vmatpush1.msra.mxu0 0.0
    %196 = vmatprep.subr.mxu0 0.0
    %197 = vmatpush1.msra.mxu0 0.0
    %198 = vmatprep.subr.mxu0 0.0
    %199 = vmatpush1.msra.mxu0 0.0
    %200 = vmatprep.subr.mxu0 0.0
    %201 = vmatpush1.msra.mxu0 0.0
    %202 = vmatprep.subr.mxu0 0.0
    %203 = vmatpush1.msra.mxu0 0.0
    %204 = vmatprep.subr.mxu0 0.0
    %205 = vmatpush1.msra.mxu0 0.0
    %206 = vmatprep.subr.mxu0 0.0
    %207 = vmatpush1.msra.mxu0 0.0
    %208 = vmatprep.subr.mxu0 0.0
    %209 = vmatpush1.msra.mxu0 0.0
    %210 = vmatprep.subr.mxu0 0.0
    %211 = vmatpush1.msra.mxu0 0.0
    %212 = vmatprep.subr.mxu0 0.0
    %213 = vmatpush1.msra.mxu0 0.0
    %214 = vmatprep.subr.mxu0 0.0
    %215 = vmatpush1.msra.mxu0 0.0
    %216 = vmatprep.subr.mxu0 0.0
    %217 = vmatpush1.msra.mxu0 0.0
    %218 = vmatprep.subr.mxu0 0.0
    %219 = vmatpush1.msra.mxu0 0.0
    %220 = vmatprep.subr.mxu0 0.0
    %221 = vmatpush1.msra.mxu0 0.0
    %222 = vmatprep.subr.mxu0 0.0
    %223 = vmatpush1.msra.mxu0 0.0
    %224 = vmatprep.subr.mxu0 0.0
    %225 = vmatpush1.msra.mxu0 0.0
    %226 = vmatprep.subr.mxu0 0.0
    %227 = vmatpush1.msra.mxu0 0.0
    %228 = vmatprep.subr.mxu0 0.0
    %229 = vmatpush1.msra.mxu0 0.0
    %230 = vmatprep.subr.mxu0 0.0
    %231 = vmatpush1.msra.mxu0 0.0
    %232 = vmatprep.subr.mxu0 0.0
    %233 = vmatpush1.msra.mxu0 0.0
    %234 = vmatprep.subr.mxu0 0.0
    %235 = vmatpush1.msra.mxu0 0.0
    %236 = vmatprep.subr.mxu0 0.0
    %237 = vmatpush1.msra.mxu0 0.0
    %238 = vmatprep.subr.mxu0 0.0
    %239 = vmatpush1.msra.mxu0 0.0
    %240 = vmatprep.subr.mxu0 0.0
    %241 = vmatpush1.msra.mxu0 0.0
    %242 = vmatprep.subr.mxu0 0.0
    %243 = vmatpush1.msra.mxu0 0.0
    %244 = vmatprep.subr.mxu0 0.0
    %245 = vmatpush1.msra.mxu0 0.0
    %246 = vmatprep.subr.mxu0 0.0
    %247 = vmatpush1.msra.mxu0 0.0
    %248 = vmatprep.subr.mxu0 0.0
    %249 = vmatpush1.msra.mxu0 0.0
    %250 = vmatprep.subr.mxu0 0.0
    %251 = vmatpush1.msra.mxu0 0.0
    %252 = vmatprep.subr.mxu0 0.0
    %253 = vmatpush1.msra.mxu0 0.0
    %254 = vmatprep.mubr.f32.mxu0 0.0
    %255 = vmatmul.mubr.f32.gmra.mrb[0].mxu0 %v185
    %v256 = vpop.f32.mrb[0].mxu0
    %v257 = vadd.f32 %v181, %v256
    %v258 = vpop.f32.mrb[0].mxu0
    %259 = vdwg.mxu0
    %v260 = vmax.f32 %v257, 0.0
    %262 = vrot.lane.b32.xlu0 %v260, 126
    %v263 = vpop.permute.xlu0 %262
    %v265 = vmax.f32 %v260, %v263
    %v266 = vpack.c.bf16 %v265, %v265
    %v267 = vld [vmem:[%s6] sm:$0xf]
    %v268 = vld [vmem:[%s1] sm:$0x3]
    %v269 = vpack.c.bf16 %v268, %v268
    %v270 = vld [vmem:[%s7] sm:$0xff]
    %v272 = vcombine.high %v270, %v270
    %v274 = vunpack.c.l.s4 1983009808
    %v275 = vunpack.c.0.s8 %v274
    %v276 = vlaneseq
    %v277 = vshrl.u32 %v276, 7
    %v278 = vsub.s32 %v275, %v277
    %v279 = vrot.slane %v270, %v278
    %v281 = vunpack.c.l.s4 1983009808
    %v282 = vunpack.c.0.s8 %v281
    %v283 = vlaneseq
    %v284 = vshrl.u32 %v283, 7
    %v285 = vsub.s32 %v282, %v284
    %v286 = vrot.slane %v272, %v285
    %v287 = vcombine.high %v279, %v279
    %v288 = vcombine.high %v286, %v286
    %v290 = vsel %vm183, %v269, 0
    %vm292 = vcmask 1041408
    %v294 = vsel %vm292, %v279, 0
    %v297 = vsel %vm292, %v287, 0
    %v300 = vsel %vm292, %v286, 0
    %v303 = vsel %vm292, %v288, 0
    %305 = vmatprep.subr.bf16.mxu0 %v297
    %306 = vmatpush1.bf16.msra.mxu0 %v294
    %307 = vmatprep.subr.bf16.mxu0 0
    %308 = vmatpush1.bf16.msra.mxu0 0
    %309 = vmatprep.subr.bf16.mxu0 0
    %310 = vmatpush1.bf16.msra.mxu0 0
    %311 = vmatprep.subr.bf16.mxu0 0
    %312 = vmatpush1.bf16.msra.mxu0 0
    %313 = vmatprep.subr.bf16.mxu0 0
    %314 = vmatpush1.bf16.msra.mxu0 0
    %315 = vmatprep.subr.bf16.mxu0 0
    %316 = vmatpush1.bf16.msra.mxu0 0
    %317 = vmatprep.subr.bf16.mxu0 0
    %318 = vmatpush1.bf16.msra.mxu0 0
    %319 = vmatprep.subr.bf16.mxu0 0
    %320 = vmatpush1.bf16.msra.mxu0 0
    %321 = vmatprep.subr.bf16.mxu0 0
    %322 = vmatpush1.bf16.msra.mxu0 0
    %323 = vmatprep.subr.bf16.mxu0 0
    %324 = vmatpush1.bf16.msra.mxu0 0
    %325 = vmatprep.subr.bf16.mxu0 0
    %326 = vmatpush1.bf16.msra.mxu0 0
    %327 = vmatprep.subr.bf16.mxu0 0
    %328 = vmatpush1.bf16.msra.mxu0 0
    %329 = vmatprep.subr.bf16.mxu0 0
    %330 = vmatpush1.bf16.msra.mxu0 0
    %331 = vmatprep.subr.bf16.mxu0 0
    %332 = vmatpush1.bf16.msra.mxu0 0
    %333 = vmatprep.subr.bf16.mxu0 0
    %334 = vmatpush1.bf16.msra.mxu0 0
    %335 = vmatprep.subr.bf16.mxu0 0
    %336 = vmatpush1.bf16.msra.mxu0 0
    %337 = vmatprep.mubr.bf16.mxu0 0
    %338 = vmatmul.mubr.bf16.gmra.mrb[0].mxu0 %v290
    %v339 = vpop.f32.mrb[0].mxu0
    %v340 = vadd.f32 0.0, %v339
    %v341 = vpop.f32.mrb[0].mxu0
    %v342 = vadd.f32 0.0, %v341
    %v343 = vpop.f32.mrb[0].mxu0
    %v344 = vpop.f32.mrb[0].mxu0
    %345 = vdwg.mxu0
    %346 = vmatprep.subr.bf16.mxu0 %v303
    %347 = vmatpush1.bf16.msra.mxu0 %v300
    %348 = vmatprep.subr.bf16.mxu0 0
    %349 = vmatpush1.bf16.msra.mxu0 0
    %350 = vmatprep.subr.bf16.mxu0 0
    %351 = vmatpush1.bf16.msra.mxu0 0
    %352 = vmatprep.subr.bf16.mxu0 0
    %353 = vmatpush1.bf16.msra.mxu0 0
    %354 = vmatprep.subr.bf16.mxu0 0
    %355 = vmatpush1.bf16.msra.mxu0 0
    %356 = vmatprep.subr.bf16.mxu0 0
    %357 = vmatpush1.bf16.msra.mxu0 0
    %358 = vmatprep.subr.bf16.mxu0 0
    %359 = vmatpush1.bf16.msra.mxu0 0
    %360 = vmatprep.subr.bf16.mxu0 0
    %361 = vmatpush1.bf16.msra.mxu0 0
    %362 = vmatprep.subr.bf16.mxu0 0
    %363 = vmatpush1.bf16.msra.mxu0 0
    %364 = vmatprep.subr.bf16.mxu0 0
    %365 = vmatpush1.bf16.msra.mxu0 0
    %366 = vmatprep.subr.bf16.mxu0 0
    %367 = vmatpush1.bf16.msra.mxu0 0
    %368 = vmatprep.subr.bf16.mxu0 0
    %369 = vmatpush1.bf16.msra.mxu0 0
    %370 = vmatprep.subr.bf16.mxu0 0
    %371 = vmatpush1.bf16.msra.mxu0 0
    %372 = vmatprep.subr.bf16.mxu0 0
    %373 = vmatpush1.bf16.msra.mxu0 0
    %374 = vmatprep.subr.bf16.mxu0 0
    %375 = vmatpush1.bf16.msra.mxu0 0
    %376 = vmatprep.subr.bf16.mxu0 0
    %377 = vmatpush1.bf16.msra.mxu0 0
    %378 = vmatprep.mubr.bf16.mxu0 0
    %379 = vmatmul.mubr.bf16.gmra.mrb[0].mxu0 %v290
    %v380 = vpop.f32.mrb[0].mxu0
    %v381 = vadd.f32 0.0, %v380
    %v382 = vpop.f32.mrb[0].mxu0
    %v383 = vadd.f32 0.0, %v382
    %v384 = vpop.f32.mrb[0].mxu0
    %v385 = vpop.f32.mrb[0].mxu0
    %386 = vdwg.mxu0
    %v389 = vunpack.c.l.s4 1966171168
    %v390 = vunpack.c.0.s8 %v389
    %v391 = vlaneseq
    %v392 = vshrl.u32 %v391, 7
    %v393 = vsub.s32 %v390, %v392
    %v394 = vrot.slane %v267, %v393
    %v395 = vcombine.high %v394, %v394
    %v397 = vunpack.c.l.s4 1966171168
    %v398 = vunpack.c.0.s8 %v397
    %v399 = vlaneseq
    %v400 = vshrl.u32 %v399, 7
    %v401 = vsub.s32 %v398, %v400
    %v402 = vrot.slane %v394, %v401
    %v404 = vunpack.c.l.s4 1966171168
    %v405 = vunpack.c.0.s8 %v404
    %v406 = vlaneseq
    %v407 = vshrl.u32 %v406, 7
    %v408 = vsub.s32 %v405, %v407
    %v409 = vrot.slane %v395, %v408
    %v410 = vcombine.high %v402, %v402
    %v411 = vcombine.high %v409, %v409
    %vm412 = vcmask 15360
    %v414 = vsel %vm412, %v266, 0
    %vm416 = vcmask 1040384
    %v418 = vsel %vm416, %v402, 0
    %v421 = vsel %vm416, %v409, 0
    %v424 = vsel %vm416, %v410, 0
    %v427 = vsel %vm416, %v411, 0
    %429 = vmatprep.subr.bf16.mxu0 %v421
    %430 = vmatpush1.bf16.msra.mxu0 %v418
    %431 = vmatprep.subr.bf16.mxu0 0
    %432 = vmatpush1.bf16.msra.mxu0 0
    %433 = vmatprep.subr.bf16.mxu0 0
    %434 = vmatpush1.bf16.msra.mxu0 0
    %435 = vmatprep.subr.bf16.mxu0 0
    %436 = vmatpush1.bf16.msra.mxu0 0
    %437 = vmatprep.subr.bf16.mxu0 0
    %438 = vmatpush1.bf16.msra.mxu0 0
    %439 = vmatprep.subr.bf16.mxu0 0
    %440 = vmatpush1.bf16.msra.mxu0 0
    %441 = vmatprep.subr.bf16.mxu0 0
    %442 = vmatpush1.bf16.msra.mxu0 0
    %443 = vmatprep.subr.bf16.mxu0 0
    %444 = vmatpush1.bf16.msra.mxu0 0
    %445 = vmatprep.subr.bf16.mxu0 0
    %446 = vmatpush1.bf16.msra.mxu0 0
    %447 = vmatprep.subr.bf16.mxu0 0
    %448 = vmatpush1.bf16.msra.mxu0 0
    %449 = vmatprep.subr.bf16.mxu0 0
    %450 = vmatpush1.bf16.msra.mxu0 0
    %451 = vmatprep.subr.bf16.mxu0 0
    %452 = vmatpush1.bf16.msra.mxu0 0
    %453 = vmatprep.subr.bf16.mxu0 0
    %454 = vmatpush1.bf16.msra.mxu0 0
    %455 = vmatprep.subr.bf16.mxu0 0
    %456 = vmatpush1.bf16.msra.mxu0 0
    %457 = vmatprep.subr.bf16.mxu0 0
    %458 = vmatpush1.bf16.msra.mxu0 0
    %459 = vmatprep.subr.bf16.mxu0 0
    %460 = vmatpush1.bf16.msra.mxu0 0
    %461 = vmatprep.mubr.bf16.mxu0 0
    %462 = vmatmul.mubr.bf16.gmra.mrb[0].mxu0 %v414
    %v463 = vpop.f32.mrb[0].mxu0
    %v464 = vadd.f32 %v340, %v463
    %v465 = vpop.f32.mrb[0].mxu0
    %v466 = vadd.f32 %v342, %v465
    %v467 = vpop.f32.mrb[0].mxu0
    %v468 = vpop.f32.mrb[0].mxu0
    %469 = vdwg.mxu0
    %470 = vmatprep.subr.bf16.mxu0 %v427
    %471 = vmatpush1.bf16.msra.mxu0 %v424
    %472 = vmatprep.subr.bf16.mxu0 0
    %473 = vmatpush1.bf16.msra.mxu0 0
    %474 = vmatprep.subr.bf16.mxu0 0
    %475 = vmatpush1.bf16.msra.mxu0 0
    %476 = vmatprep.subr.bf16.mxu0 0
    %477 = vmatpush1.bf16.msra.mxu0 0
    %478 = vmatprep.subr.bf16.mxu0 0
    %479 = vmatpush1.bf16.msra.mxu0 0
    %480 = vmatprep.subr.bf16.mxu0 0
    %481 = vmatpush1.bf16.msra.mxu0 0
    %482 = vmatprep.subr.bf16.mxu0 0
    %483 = vmatpush1.bf16.msra.mxu0 0
    %484 = vmatprep.subr.bf16.mxu0 0
    %485 = vmatpush1.bf16.msra.mxu0 0
    %486 = vmatprep.subr.bf16.mxu0 0
    %487 = vmatpush1.bf16.msra.mxu0 0
    %488 = vmatprep.subr.bf16.mxu0 0
    %489 = vmatpush1.bf16.msra.mxu0 0
    %490 = vmatprep.subr.bf16.mxu0 0
    %491 = vmatpush1.bf16.msra.mxu0 0
    %492 = vmatprep.subr.bf16.mxu0 0
    %493 = vmatpush1.bf16.msra.mxu0 0
    %494 = vmatprep.subr.bf16.mxu0 0
    %495 = vmatpush1.bf16.msra.mxu0 0
    %496 = vmatprep.subr.bf16.mxu0 0
    %497 = vmatpush1.bf16.msra.mxu0 0
    %498 = vmatprep.subr.bf16.mxu0 0
    %499 = vmatpush1.bf16.msra.mxu0 0
    %500 = vmatprep.subr.bf16.mxu0 0
    %501 = vmatpush1.bf16.msra.mxu0 0
    %502 = vmatprep.mubr.bf16.mxu0 0
    %503 = vmatmul.mubr.bf16.gmra.mrb[0].mxu0 %v414
    %v504 = vpop.f32.mrb[0].mxu0
    %v505 = vadd.f32 %v381, %v504
    %v506 = vpop.f32.mrb[0].mxu0
    %v507 = vadd.f32 %v383, %v506
    %v508 = vpop.f32.mrb[0].mxu0
    %v509 = vpop.f32.mrb[0].mxu0
    %510 = vdwg.mxu0
    %v511 = vld [vmem:[%s8] sm:$0xf]
    %v513 = vlaneseq
    %v514 = vshrl.u32 %v513, 7
    %v515 = vsub.s32 0, %v514
    %v516 = vrot.slane %v511, %v515
    %v517 = vlaneseq
    %v518 = vshrl.u32 %v517, 7
    %v519 = vsub.s32 1, %v518
    %v520 = vrot.slane %v511, %v519
    %v521 = vlaneseq
    %v522 = vshrl.u32 %v521, 7
    %v523 = vsub.s32 2, %v522
    %v524 = vrot.slane %v511, %v523
    %v525 = vlaneseq
    %v526 = vshrl.u32 %v525, 7
    %v527 = vsub.s32 3, %v526
    %v528 = vrot.slane %v511, %v527
    %v533 = vadd.f32 %v464, %v516
    %v534 = vadd.f32 %v466, %v520
    %v535 = vadd.f32 %v505, %v524
    %v536 = vadd.f32 %v507, %v528
    %v537 = vmax.f32 %v533, 0.0
    %v538 = vmax.f32 %v534, 0.0
    %v539 = vmax.f32 %v535, 0.0
    %v540 = vmax.f32 %v536, 0.0
    %v541 = vpack.c.bf16 %v537, %v537
    %v542 = vpack.c.bf16 %v538, %v538
    %v543 = vpack.c.bf16 %v539, %v539
    %v544 = vpack.c.bf16 %v540, %v540
    %v545 = vld [vmem:[#allocation2] sm:$0xff]
    %v546 = vld [vmem:[#allocation2 + $0x8] sm:$0xff]
    %v547 = vld [vmem:[#allocation2 + $0x10] sm:$0xff]
    %v548 = vld [vmem:[#allocation2 + $0x18] sm:$0xff]
    %v549 = vld [vmem:[#allocation2 + $0x20] sm:$0xff]
    %v550 = vld [vmem:[#allocation2 + $0x28] sm:$0xff]
    %v551 = vld [vmem:[#allocation2 + $0x30] sm:$0xff]
    %v552 = vld [vmem:[#allocation2 + $0x38] sm:$0xff]
    %v553 = vld [vmem:[#allocation2 + $0x40] sm:$0xff]
    %v554 = vld [vmem:[#allocation2 + $0x48] sm:$0xff]
    %v555 = vld [vmem:[#allocation2 + $0x50] sm:$0xff]
    %v556 = vld [vmem:[#allocation2 + $0x58] sm:$0xff]
    %v557 = vld [vmem:[#allocation2 + $0x60] sm:$0xff]
    %v558 = vld [vmem:[#allocation2 + $0x68] sm:$0xff]
    %v559 = vld [vmem:[#allocation2 + $0x70] sm:$0xff]
    %v560 = vld [vmem:[#allocation2 + $0x78] sm:$0xff]
    %v561 = vld [vmem:[#allocation2 + $0x80] sm:$0xff]
    %v562 = vld [vmem:[#allocation2 + $0x88] sm:$0xff]
    %v563 = vld [vmem:[#allocation2 + $0x90] sm:$0xff]
    %v564 = vld [vmem:[#allocation2 + $0x98] sm:$0xff]
    %v565 = vld [vmem:[#allocation2 + $0xa0] sm:$0xff]
    %v566 = vld [vmem:[#allocation2 + $0xa8] sm:$0xff]
    %v567 = vld [vmem:[#allocation2 + $0xb0] sm:$0xff]
    %v568 = vld [vmem:[#allocation2 + $0xb8] sm:$0xff]
    %v569 = vld [vmem:[#allocation2 + $0xc0] sm:$0xff]
    %v570 = vld [vmem:[#allocation2 + $0xc8] sm:$0xff]
    %v571 = vld [vmem:[#allocation2 + $0xd0] sm:$0xff]
    %v572 = vld [vmem:[#allocation2 + $0xd8] sm:$0xff]
    %v573 = vld [vmem:[#allocation2 + $0xe0] sm:$0xff]
    %v574 = vld [vmem:[#allocation2 + $0xe8] sm:$0xff]
    %v575 = vld [vmem:[#allocation2 + $0xf0] sm:$0xff]
    %v576 = vld [vmem:[#allocation2 + $0xf8] sm:$0xff]
    %v577 = vld [vmem:[#allocation2 + $0x100] sm:$0xff]
    %v578 = vld [vmem:[#allocation2 + $0x108] sm:$0xff]
    %v579 = vld [vmem:[#allocation2 + $0x110] sm:$0xff]
    %v580 = vld [vmem:[#allocation2 + $0x118] sm:$0xff]
    %v581 = vld [vmem:[#allocation2 + $0x120] sm:$0xff]
    %v582 = vld [vmem:[#allocation2 + $0x128] sm:$0xff]
    %v583 = vld [vmem:[#allocation2 + $0x130] sm:$0xff]
    %v584 = vld [vmem:[#allocation2 + $0x138] sm:$0xff]
    %v585 = vld [vmem:[#allocation2 + $0x140] sm:$0xff]
    %v586 = vld [vmem:[#allocation2 + $0x148] sm:$0xff]
    %v587 = vld [vmem:[#allocation2 + $0x150] sm:$0xff]
    %v588 = vld [vmem:[#allocation2 + $0x158] sm:$0xff]
    %v589 = vld [vmem:[#allocation2 + $0x160] sm:$0xff]
    %v590 = vld [vmem:[#allocation2 + $0x168] sm:$0xff]
    %v591 = vld [vmem:[#allocation2 + $0x170] sm:$0xff]
    %v592 = vld [vmem:[#allocation2 + $0x178] sm:$0xff]
    %v593 = vld [vmem:[#allocation2 + $0x180] sm:$0xff]
    %v594 = vld [vmem:[#allocation2 + $0x188] sm:$0xff]
    %v595 = vld [vmem:[#allocation2 + $0x190] sm:$0xff]
    %v596 = vld [vmem:[#allocation2 + $0x198] sm:$0xff]
    %v597 = vld [vmem:[#allocation2 + $0x1a0] sm:$0xff]
    %v598 = vld [vmem:[#allocation2 + $0x1a8] sm:$0xff]
    %v599 = vld [vmem:[#allocation2 + $0x1b0] sm:$0xff]
    %v600 = vld [vmem:[#allocation2 + $0x1b8] sm:$0xff]
    %v601 = vld [vmem:[#allocation2 + $0x1c0] sm:$0xff]
    %v602 = vld [vmem:[#allocation2 + $0x1c8] sm:$0xff]
    %v603 = vld [vmem:[#allocation2 + $0x1d0] sm:$0xff]
    %v604 = vld [vmem:[#allocation2 + $0x1d8] sm:$0xff]
    %v605 = vld [vmem:[#allocation2 + $0x1e0] sm:$0xff]
    %v606 = vld [vmem:[#allocation2 + $0x1e8] sm:$0xff]
    %v607 = vld [vmem:[#allocation2 + $0x1f0] sm:$0xff]
    %v608 = vld [vmem:[#allocation2 + $0x1f8] sm:$0xff]
    %v609 = vld [vmem:[%s10] sm:$0x3]
    %v611 = vlaneseq
    %v612 = vshrl.u32 %v611, 7
    %v613 = vsub.s32 0, %v612
    %v614 = vrot.slane %v609, %v613
    %v615 = vlaneseq
    %v616 = vshrl.u32 %v615, 7
    %v617 = vsub.s32 1, %v616
    %v618 = vrot.slane %v609, %v617
    %v685 = vunpack.c.l.b16 %v545
    %v686 = vunpack.c.h.b16 %v545
    %v687 = vunpack.c.l.b16 %v546
    %v688 = vunpack.c.h.b16 %v546
    %v689 = vunpack.c.l.b16 %v547
    %v690 = vunpack.c.h.b16 %v547
    %v691 = vunpack.c.l.b16 %v548
    %v692 = vunpack.c.h.b16 %v548
    %v693 = vunpack.c.l.b16 %v549
    %v694 = vunpack.c.h.b16 %v549
    %v695 = vunpack.c.l.b16 %v550
    %v696 = vunpack.c.h.b16 %v550
    %v697 = vunpack.c.l.b16 %v551
    %v698 = vunpack.c.h.b16 %v551
    %v699 = vunpack.c.l.b16 %v552
    %v700 = vunpack.c.h.b16 %v552
    %v701 = vunpack.c.l.b16 %v553
    %v702 = vunpack.c.h.b16 %v553
    %v703 = vunpack.c.l.b16 %v554
    %v704 = vunpack.c.h.b16 %v554
    %v705 = vunpack.c.l.b16 %v555
    %v706 = vunpack.c.h.b16 %v555
    %v707 = vunpack.c.l.b16 %v556
    %v708 = vunpack.c.h.b16 %v556
    %v709 = vunpack.c.l.b16 %v557
    %v710 = vunpack.c.h.b16 %v557
    %v711 = vunpack.c.l.b16 %v558
    %v712 = vunpack.c.h.b16 %v558
    %v713 = vunpack.c.l.b16 %v559
    %v714 = vunpack.c.h.b16 %v559
    %v715 = vunpack.c.l.b16 %v560
    %v716 = vunpack.c.h.b16 %v560
    %v717 = vunpack.c.l.b16 %v561
    %v718 = vunpack.c.h.b16 %v561
    %v719 = vunpack.c.l.b16 %v562
    %v720 = vunpack.c.h.b16 %v562
    %v721 = vunpack.c.l.b16 %v563
    %v722 = vunpack.c.h.b16 %v563
    %v723 = vunpack.c.l.b16 %v564
    %v724 = vunpack.c.h.b16 %v564
    %v725 = vunpack.c.l.b16 %v565
    %v726 = vunpack.c.h.b16 %v565
    %v727 = vunpack.c.l.b16 %v566
    %v728 = vunpack.c.h.b16 %v566
    %v729 = vunpack.c.l.b16 %v567
    %v730 = vunpack.c.h.b16 %v567
    %v731 = vunpack.c.l.b16 %v568
    %v732 = vunpack.c.h.b16 %v568
    %v733 = vunpack.c.l.b16 %v569
    %v734 = vunpack.c.h.b16 %v569
    %v735 = vunpack.c.l.b16 %v570
    %v736 = vunpack.c.h.b16 %v570
    %v737 = vunpack.c.l.b16 %v571
    %v738 = vunpack.c.h.b16 %v571
    %v739 = vunpack.c.l.b16 %v572
    %v740 = vunpack.c.h.b16 %v572
    %v741 = vunpack.c.l.b16 %v573
    %v742 = vunpack.c.h.b16 %v573
    %v743 = vunpack.c.l.b16 %v574
    %v744 = vunpack.c.h.b16 %v574
    %v745 = vunpack.c.l.b16 %v575
    %v746 = vunpack.c.h.b16 %v575
    %v747 = vunpack.c.l.b16 %v576
    %v748 = vunpack.c.h.b16 %v576
    %v749 = vunpack.c.l.b16 %v577
    %v750 = vunpack.c.h.b16 %v577
    %v751 = vunpack.c.l.b16 %v578
    %v752 = vunpack.c.h.b16 %v578
    %v753 = vunpack.c.l.b16 %v579
    %v754 = vunpack.c.h.b16 %v579
    %v755 = vunpack.c.l.b16 %v580
    %v756 = vunpack.c.h.b16 %v580
    %v757 = vunpack.c.l.b16 %v581
    %v758 = vunpack.c.h.b16 %v581
    %v759 = vunpack.c.l.b16 %v582
    %v760 = vunpack.c.h.b16 %v582
    %v761 = vunpack.c.l.b16 %v583
    %v762 = vunpack.c.h.b16 %v583
    %v763 = vunpack.c.l.b16 %v584
    %v764 = vunpack.c.h.b16 %v584
    %v765 = vunpack.c.l.b16 %v585
    %v766 = vunpack.c.h.b16 %v585
    %v767 = vunpack.c.l.b16 %v586
    %v768 = vunpack.c.h.b16 %v586
    %v769 = vunpack.c.l.b16 %v587
    %v770 = vunpack.c.h.b16 %v587
    %v771 = vunpack.c.l.b16 %v588
    %v772 = vunpack.c.h.b16 %v588
    %v773 = vunpack.c.l.b16 %v589
    %v774 = vunpack.c.h.b16 %v589
    %v775 = vunpack.c.l.b16 %v590
    %v776 = vunpack.c.h.b16 %v590
    %v777 = vunpack.c.l.b16 %v591
    %v778 = vunpack.c.h.b16 %v591
    %v779 = vunpack.c.l.b16 %v592
    %v780 = vunpack.c.h.b16 %v592
    %v781 = vunpack.c.l.b16 %v593
    %v782 = vunpack.c.h.b16 %v593
    %v783 = vunpack.c.l.b16 %v594
    %v784 = vunpack.c.h.b16 %v594
    %v785 = vunpack.c.l.b16 %v595
    %v786 = vunpack.c.h.b16 %v595
    %v787 = vunpack.c.l.b16 %v596
    %v788 = vunpack.c.h.b16 %v596
    %v789 = vunpack.c.l.b16 %v597
    %v790 = vunpack.c.h.b16 %v597
    %v791 = vunpack.c.l.b16 %v598
    %v792 = vunpack.c.h.b16 %v598
    %v793 = vunpack.c.l.b16 %v599
    %v794 = vunpack.c.h.b16 %v599
    %v795 = vunpack.c.l.b16 %v600
    %v796 = vunpack.c.h.b16 %v600
    %v797 = vunpack.c.l.b16 %v601
    %v798 = vunpack.c.h.b16 %v601
    %v799 = vunpack.c.l.b16 %v602
    %v800 = vunpack.c.h.b16 %v602
    %v801 = vunpack.c.l.b16 %v603
    %v802 = vunpack.c.h.b16 %v603
    %v803 = vunpack.c.l.b16 %v604
    %v804 = vunpack.c.h.b16 %v604
    %v805 = vunpack.c.l.b16 %v605
    %v806 = vunpack.c.h.b16 %v605
    %v807 = vunpack.c.l.b16 %v606
    %v808 = vunpack.c.h.b16 %v606
    %v809 = vunpack.c.l.b16 %v607
    %v810 = vunpack.c.h.b16 %v607
    %v811 = vunpack.c.l.b16 %v608
    %v812 = vunpack.c.h.b16 %v608
    %v813 = vpack.c.b16 %v687, %v685
    %v814 = vpack.c.b16 %v688, %v686
    %v815 = vpack.c.b16 %v691, %v689
    %v816 = vpack.c.b16 %v692, %v690
    %v817 = vpack.c.b16 %v695, %v693
    %v818 = vpack.c.b16 %v696, %v694
    %v819 = vpack.c.b16 %v699, %v697
    %v820 = vpack.c.b16 %v700, %v698
    %v821 = vpack.c.b16 %v703, %v701
    %v822 = vpack.c.b16 %v704, %v702
    %v823 = vpack.c.b16 %v707, %v705
    %v824 = vpack.c.b16 %v708, %v706
    %v825 = vpack.c.b16 %v711, %v709
    %v826 = vpack.c.b16 %v712, %v710
    %v827 = vpack.c.b16 %v715, %v713
    %v828 = vpack.c.b16 %v716, %v714
    %v829 = vpack.c.b16 %v719, %v717
    %v830 = vpack.c.b16 %v720, %v718
    %v831 = vpack.c.b16 %v723, %v721
    %v832 = vpack.c.b16 %v724, %v722
    %v833 = vpack.c.b16 %v727, %v725
    %v834 = vpack.c.b16 %v728, %v726
    %v835 = vpack.c.b16 %v731, %v729
    %v836 = vpack.c.b16 %v732, %v730
    %v837 = vpack.c.b16 %v735, %v733
    %v838 = vpack.c.b16 %v736, %v734
    %v839 = vpack.c.b16 %v739, %v737
    %v840 = vpack.c.b16 %v740, %v738
    %v841 = vpack.c.b16 %v743, %v741
    %v842 = vpack.c.b16 %v744, %v742
    %v843 = vpack.c.b16 %v747, %v745
    %v844 = vpack.c.b16 %v748, %v746
    %v845 = vpack.c.b16 %v751, %v749
    %v846 = vpack.c.b16 %v752, %v750
    %v847 = vpack.c.b16 %v755, %v753
    %v848 = vpack.c.b16 %v756, %v754
    %v849 = vpack.c.b16 %v759, %v757
    %v850 = vpack.c.b16 %v760, %v758
    %v851 = vpack.c.b16 %v763, %v761
    %v852 = vpack.c.b16 %v764, %v762
    %v853 = vpack.c.b16 %v767, %v765
    %v854 = vpack.c.b16 %v768, %v766
    %v855 = vpack.c.b16 %v771, %v769
    %v856 = vpack.c.b16 %v772, %v770
    %v857 = vpack.c.b16 %v775, %v773
    %v858 = vpack.c.b16 %v776, %v774
    %v859 = vpack.c.b16 %v779, %v777
    %v860 = vpack.c.b16 %v780, %v778
    %v861 = vpack.c.b16 %v783, %v781
    %v862 = vpack.c.b16 %v784, %v782
    %v863 = vpack.c.b16 %v787, %v785
    %v864 = vpack.c.b16 %v788, %v786
    %v865 = vpack.c.b16 %v791, %v789
    %v866 = vpack.c.b16 %v792, %v790
    %v867 = vpack.c.b16 %v795, %v793
    %v868 = vpack.c.b16 %v796, %v794
    %v869 = vpack.c.b16 %v799, %v797
    %v870 = vpack.c.b16 %v800, %v798
    %v871 = vpack.c.b16 %v803, %v801
    %v872 = vpack.c.b16 %v804, %v802
    %v873 = vpack.c.b16 %v807, %v805
    %v874 = vpack.c.b16 %v808, %v806
    %v875 = vpack.c.b16 %v811, %v809
    %v876 = vpack.c.b16 %v812, %v810
    %941 = vmatprep.subr.bf16.mxu0 %v814
    %942 = vmatpush1.bf16.msra.mxu0 %v813
    %943 = vmatprep.subr.bf16.mxu0 %v816
    %944 = vmatpush1.bf16.msra.mxu0 %v815
    %945 = vmatprep.subr.bf16.mxu0 %v818
    %946 = vmatpush1.bf16.msra.mxu0 %v817
    %947 = vmatprep.subr.bf16.mxu0 %v820
    %948 = vmatpush1.bf16.msra.mxu0 %v819
    %949 = vmatprep.subr.bf16.mxu0 %v822
    %950 = vmatpush1.bf16.msra.mxu0 %v821
    %951 = vmatprep.subr.bf16.mxu0 %v824
    %952 = vmatpush1.bf16.msra.mxu0 %v823
    %953 = vmatprep.subr.bf16.mxu0 %v826
    %954 = vmatpush1.bf16.msra.mxu0 %v825
    %955 = vmatprep.subr.bf16.mxu0 %v828
    %956 = vmatpush1.bf16.msra.mxu0 %v827
    %957 = vmatprep.subr.bf16.mxu0 %v830
    %958 = vmatpush1.bf16.msra.mxu0 %v829
    %959 = vmatprep.subr.bf16.mxu0 %v832
    %960 = vmatpush1.bf16.msra.mxu0 %v831
    %961 = vmatprep.subr.bf16.mxu0 %v834
    %962 = vmatpush1.bf16.msra.mxu0 %v833
    %963 = vmatprep.subr.bf16.mxu0 %v836
    %964 = vmatpush1.bf16.msra.mxu0 %v835
    %965 = vmatprep.subr.bf16.mxu0 %v838
    %966 = vmatpush1.bf16.msra.mxu0 %v837
    %967 = vmatprep.subr.bf16.mxu0 %v840
    %968 = vmatpush1.bf16.msra.mxu0 %v839
    %969 = vmatprep.subr.bf16.mxu0 %v842
    %970 = vmatpush1.bf16.msra.mxu0 %v841
    %971 = vmatprep.subr.bf16.mxu0 %v844
    %972 = vmatpush1.bf16.msra.mxu0 %v843
    %973 = vmatprep.mubr.bf16.mxu0 %v542
    %974 = vmatmul.mubr.bf16.gmra.mrb[0].mxu0 %v541
    %v975 = vpop.f32.mrb[0].mxu0
    %v976 = vadd.f32 %v614, %v975
    %v977 = vpop.f32.mrb[0].mxu0
    %v978 = vadd.f32 %v618, %v977
    %v979 = vpop.f32.mrb[0].mxu0
    %v980 = vpop.f32.mrb[0].mxu0
    %981 = vdwg.mxu0
    %982 = vmatprep.subr.bf16.mxu0 %v846
    %983 = vmatpush1.bf16.msra.mxu0 %v845
    %984 = vmatprep.subr.bf16.mxu0 %v848
    %985 = vmatpush1.bf16.msra.mxu0 %v847
    %986 = vmatprep.subr.bf16.mxu0 %v850
    %987 = vmatpush1.bf16.msra.mxu0 %v849
    %988 = vmatprep.subr.bf16.mxu0 %v852
    %989 = vmatpush1.bf16.msra.mxu0 %v851
    %990 = vmatprep.subr.bf16.mxu0 %v854
    %991 = vmatpush1.bf16.msra.mxu0 %v853
    %992 = vmatprep.subr.bf16.mxu0 %v856
    %993 = vmatpush1.bf16.msra.mxu0 %v855
    %994 = vmatprep.subr.bf16.mxu0 %v858
    %995 = vmatpush1.bf16.msra.mxu0 %v857
    %996 = vmatprep.subr.bf16.mxu0 %v860
    %997 = vmatpush1.bf16.msra.mxu0 %v859
    %998 = vmatprep.subr.bf16.mxu0 %v862
    %999 = vmatpush1.bf16.msra.mxu0 %v861
    %1000 = vmatprep.subr.bf16.mxu0 %v864
    %1001 = vmatpush1.bf16.msra.mxu0 %v863
    %1002 = vmatprep.subr.bf16.mxu0 %v866
    %1003 = vmatpush1.bf16.msra.mxu0 %v865
    %1004 = vmatprep.subr.bf16.mxu0 %v868
    %1005 = vmatpush1.bf16.msra.mxu0 %v867
    %1006 = vmatprep.subr.bf16.mxu0 %v870
    %1007 = vmatpush1.bf16.msra.mxu0 %v869
    %1008 = vmatprep.subr.bf16.mxu0 %v872
    %1009 = vmatpush1.bf16.msra.mxu0 %v871
    %1010 = vmatprep.subr.bf16.mxu0 %v874
    %1011 = vmatpush1.bf16.msra.mxu0 %v873
    %1012 = vmatprep.subr.bf16.mxu0 %v876
    %1013 = vmatpush1.bf16.msra.mxu0 %v875
    %1014 = vmatprep.mubr.bf16.mxu0 %v544
    %1015 = vmatmul.mubr.bf16.gmra.mrb[0].mxu0 %v543
    %v1016 = vpop.f32.mrb[0].mxu0
    %v1017 = vadd.f32 %v976, %v1016
    %v1018 = vpop.f32.mrb[0].mxu0
    %v1019 = vadd.f32 %v978, %v1018
    %v1020 = vpop.f32.mrb[0].mxu0
    %v1021 = vpop.f32.mrb[0].mxu0
    %1022 = vdwg.mxu0
    %v1023 = vmax.f32 %v1017, 0.0
    %v1024 = vmax.f32 %v1019, 0.0
    %v1025 = vpack.c.bf16 %v1023, %v1023
    %v1026 = vpack.c.bf16 %v1024, %v1024
    %v1027 = vld [vmem:[%s11] sm:$0xf]
    %v1028 = vld [vmem:[%s11 + $0x4] sm:$0xf]
    %v1029 = vld [vmem:[%s11 + $0x8] sm:$0xf]
    %v1030 = vld [vmem:[%s11 + $0xc] sm:$0xf]
    %v1031 = vld [vmem:[%s11 + $0x10] sm:$0xf]
    %v1032 = vld [vmem:[%s11 + $0x14] sm:$0xf]
    %v1033 = vld [vmem:[%s11 + $0x18] sm:$0xf]
    %v1034 = vld [vmem:[%s11 + $0x1c] sm:$0xf]
    %v1035 = vld [vmem:[%s11 + $0x20] sm:$0xf]
    %v1036 = vld [vmem:[%s11 + $0x24] sm:$0xf]
    %v1037 = vld [vmem:[%s11 + $0x28] sm:$0xf]
    %v1038 = vld [vmem:[%s11 + $0x2c] sm:$0xf]
    %v1039 = vld [vmem:[%s11 + $0x30] sm:$0xf]
    %v1040 = vld [vmem:[%s11 + $0x34] sm:$0xf]
    %v1041 = vld [vmem:[%s11 + $0x38] sm:$0xf]
    %v1042 = vld [vmem:[%s11 + $0x3c] sm:$0xf]
    %v1043 = vld [vmem:[%s11 + $0x40] sm:$0xf]
    %v1044 = vld [vmem:[%s11 + $0x44] sm:$0xf]
    %v1045 = vld [vmem:[%s11 + $0x48] sm:$0xf]
    %v1046 = vld [vmem:[%s11 + $0x4c] sm:$0xf]
    %v1047 = vld [vmem:[%s11 + $0x50] sm:$0xf]
    %v1048 = vld [vmem:[%s11 + $0x54] sm:$0xf]
    %v1049 = vld [vmem:[%s11 + $0x58] sm:$0xf]
    %v1050 = vld [vmem:[%s11 + $0x5c] sm:$0xf]
    %v1051 = vld [vmem:[%s11 + $0x60] sm:$0xf]
    %v1052 = vld [vmem:[%s11 + $0x64] sm:$0xf]
    %v1053 = vld [vmem:[%s11 + $0x68] sm:$0xf]
    %v1054 = vld [vmem:[%s11 + $0x6c] sm:$0xf]
    %v1055 = vld [vmem:[%s11 + $0x70] sm:$0xf]
    %v1056 = vld [vmem:[%s11 + $0x74] sm:$0xf]
    %v1057 = vld [vmem:[%s11 + $0x78] sm:$0xf]
    %v1058 = vld [vmem:[%s11 + $0x7c] sm:$0xf]
    %v1059 = vld [vmem:[%s12] sm:$0x1]
    %v1061 = vlaneseq
    %v1062 = vshrl.u32 %v1061, 7
    %v1063 = vsub.s32 0, %v1062
    %v1064 = vrot.slane %v1059, %v1063
    %v1098 = vunpack.c.l.b16 %v1027
    %v1099 = vunpack.c.l.b16 %v1028
    %v1100 = vunpack.c.l.b16 %v1029
    %v1101 = vunpack.c.l.b16 %v1030
    %v1102 = vunpack.c.l.b16 %v1031
    %v1103 = vunpack.c.l.b16 %v1032
    %v1104 = vunpack.c.l.b16 %v1033
    %v1105 = vunpack.c.l.b16 %v1034
    %v1106 = vunpack.c.l.b16 %v1035
    %v1107 = vunpack.c.l.b16 %v1036
    %v1108 = vunpack.c.l.b16 %v1037
    %v1109 = vunpack.c.l.b16 %v1038
    %v1110 = vunpack.c.l.b16 %v1039
    %v1111 = vunpack.c.l.b16 %v1040
    %v1112 = vunpack.c.l.b16 %v1041
    %v1113 = vunpack.c.l.b16 %v1042
    %v1114 = vunpack.c.l.b16 %v1043
    %v1115 = vunpack.c.l.b16 %v1044
    %v1116 = vunpack.c.l.b16 %v1045
    %v1117 = vunpack.c.l.b16 %v1046
    %v1118 = vunpack.c.l.b16 %v1047
    %v1119 = vunpack.c.l.b16 %v1048
    %v1120 = vunpack.c.l.b16 %v1049
    %v1121 = vunpack.c.l.b16 %v1050
    %v1122 = vunpack.c.l.b16 %v1051
    %v1123 = vunpack.c.l.b16 %v1052
    %v1124 = vunpack.c.l.b16 %v1053
    %v1125 = vunpack.c.l.b16 %v1054
    %v1126 = vunpack.c.l.b16 %v1055
    %v1127 = vunpack.c.l.b16 %v1056
    %v1128 = vunpack.c.l.b16 %v1057
    %v1129 = vunpack.c.l.b16 %v1058
    %v1130 = vpack.c.b16 %v1099, %v1098
    %v1131 = vpack.c.b16 %v1101, %v1100
    %v1132 = vpack.c.b16 %v1103, %v1102
    %v1133 = vpack.c.b16 %v1105, %v1104
    %v1134 = vpack.c.b16 %v1107, %v1106
    %v1135 = vpack.c.b16 %v1109, %v1108
    %v1136 = vpack.c.b16 %v1111, %v1110
    %v1137 = vpack.c.b16 %v1113, %v1112
    %v1138 = vpack.c.b16 %v1115, %v1114
    %v1139 = vpack.c.b16 %v1117, %v1116
    %v1140 = vpack.c.b16 %v1119, %v1118
    %v1141 = vpack.c.b16 %v1121, %v1120
    %v1142 = vpack.c.b16 %v1123, %v1122
    %v1143 = vpack.c.b16 %v1125, %v1124
    %v1144 = vpack.c.b16 %v1127, %v1126
    %v1145 = vpack.c.b16 %v1129, %v1128
    %1162 = vmatprep.subr.bf16.mxu0 0
    %1163 = vmatpush1.bf16.msra.mxu0 %v1130
    %1164 = vmatprep.subr.bf16.mxu0 0
    %1165 = vmatpush1.bf16.msra.mxu0 %v1131
    %1166 = vmatprep.subr.bf16.mxu0 0
    %1167 = vmatpush1.bf16.msra.mxu0 %v1132
    %1168 = vmatprep.subr.bf16.mxu0 0
    %1169 = vmatpush1.bf16.msra.mxu0 %v1133
    %1170 = vmatprep.subr.bf16.mxu0 0
    %1171 = vmatpush1.bf16.msra.mxu0 %v1134
    %1172 = vmatprep.subr.bf16.mxu0 0
    %1173 = vmatpush1.bf16.msra.mxu0 %v1135
    %1174 = vmatprep.subr.bf16.mxu0 0
    %1175 = vmatpush1.bf16.msra.mxu0 %v1136
    %1176 = vmatprep.subr.bf16.mxu0 0
    %1177 = vmatpush1.bf16.msra.mxu0 %v1137
    %1178 = vmatprep.subr.bf16.mxu0 0
    %1179 = vmatpush1.bf16.msra.mxu0 %v1138
    %1180 = vmatprep.subr.bf16.mxu0 0
    %1181 = vmatpush1.bf16.msra.mxu0 %v1139
    %1182 = vmatprep.subr.bf16.mxu0 0
    %1183 = vmatpush1.bf16.msra.mxu0 %v1140
    %1184 = vmatprep.subr.bf16.mxu0 0
    %1185 = vmatpush1.bf16.msra.mxu0 %v1141
    %1186 = vmatprep.subr.bf16.mxu0 0
    %1187 = vmatpush1.bf16.msra.mxu0 %v1142
    %1188 = vmatprep.subr.bf16.mxu0 0
    %1189 = vmatpush1.bf16.msra.mxu0 %v1143
    %1190 = vmatprep.subr.bf16.mxu0 0
    %1191 = vmatpush1.bf16.msra.mxu0 %v1144
    %1192 = vmatprep.subr.bf16.mxu0 0
    %1193 = vmatpush1.bf16.msra.mxu0 %v1145
    %1194 = vmatprep.mubr.bf16.mxu0 %v1026
    %1195 = vmatmul.mubr.bf16.gmra.mrb[0].mxu0 %v1025
    %v1196 = vpop.f32.mrb[0].mxu0
    %v1197 = vadd.f32 %v1064, %v1196
    %v1198 = vpop.f32.mrb[0].mxu0
    %v1199 = vpop.f32.mrb[0].mxu0
    %v1200 = vpop.f32.mrb[0].mxu0
    %1201 = vdwg.mxu0
    %vm1202 = vcmask 9216
    %v1203 = vsel %vm1202, %v1197, -inf
    %1204 = vmax.xlane.f32.xlu0 %v1203
    %v1205 = vpop.xlane.xlu0 %1204
    %v1206 = vsub.f32 %v1197, %v1205
    %v1207 = vmul.f32 %v1206, 1.442695
    %v1208 = vpow.pop %v1207
    %v1209 = vsel %vm1202, %v1208, 0.0
    %1210 = vadd.xlane.f32.xlu0 %v1209
    %v1211 = vpop.xlane.xlu0 %1210
    %v1212 = vrcp.pop %v1211
    %v1213 = vmul.f32 %v1208, %v1212
    %1214 = vst.msk [vmem:[#allocation5] sm:$0x3] %vm1202, %v1213
    // Predicated region
    $region58: #{convnet_forward.1} parent=1 // pred_check
      _
    $region59: #{convnet_forward.1} parent=1 // pred_check_branch
      %1216 = sbr.rel (0) target = $region61
    $region60: #{convnet_forward.1} parent=1 // pred_region
      %s1218 = ssub.s32 32, 32
      %1219 = vsyncadd [#allocation4], %s1218
      %s1221 = sshll.u32 [#allocation5], 4
      %s1222 = int_to_ptr.vmem [resolvable:$true] %s1221
      %1224 = dma.vmem_to_hbm [thread:$0]  %s1222, 32, %s13, [#allocation4]
    $region61: #{convnet_forward.1} parent=1 // pred_fallthru
      _
    // Predicated region
    $region62: #{convnet_forward.1} parent=1 // pred_check
      _
    $region63: #{convnet_forward.1} parent=1 // pred_check_branch
      %1226 = sbr.rel (0) target = $region65
    $region64: #{convnet_forward.1} parent=1 // pred_region
      %1227 = dma.done [#allocation4], 32
    $region65: #{convnet_forward.1} parent=1 // pred_fallthru
      _
    %1228 = vsyncpa [#allocation3], 1
    %1229 = vsyncpa [#allocation4], 1

</llo_original>
